<compile_context>
chip_gen: v5e
topology: v5e:2x2
jax: 0.10.0
libtpu: 0.0.40
codegen_flags: <defaults>
</compile_context>

<pallas_src>
import jax
import jax.numpy as jnp
from jax.experimental import pallas as pl
from jax.experimental.pallas import tpu as pltpu


def _composed_taskmap_kernel(x_ref, xd_ref, wt_ref, b_ref, kron_ref, exp_ref, f0_ref,
                             y_ref, yd_ref, jjd_ref):
    tile_n, d = x_ref.shape
    num_maps = wt_ref.shape[0]
    d2 = d * d

    x = x_ref[...].astype(jnp.float32)
    xd = xd_ref[...].astype(jnp.float32)

    jflat = None   # (tile_n, d*d), row-major flattened J
    jdflat = None  # (tile_n, d*d), row-major flattened Jd

    # TODO(synk): static unroll is fine for a handful of taskmaps; switch to
    # lax.fori_loop with dynamic wt_ref[k]/kron_ref[k] indexing if K grows large.
    for k in range(num_maps):
        wt = wt_ref[k]                               # (d, d) = W_k^T
        bk = b_ref[pl.ds(k, 1), :]                   # (1, d)

        # Fused forward matmul: [x; xd] @ W_k^T   -> z rows / (W_k xd) rows.
        xxd = jnp.concatenate([x, xd], axis=0)       # (2n, d)
        zz = jnp.dot(xxd, wt, preferred_element_type=jnp.float32)
        y = jnp.tanh(zz[:tile_n] + bk)               # psi_k(x)
        s = 1.0 - y * y                              # diag of J_k
        yd = s * zz[tile_n:]                         # xd @ J_k^T
        t = -2.0 * y * yd                            # diag of Jd_k

        st = jnp.concatenate([s, t], axis=0)         # (2n, d)

        if k == 0:
            # Peeled first step (J = I, Jd = 0):
            #   J  <- diag(s) W_0,  Jd <- diag(t) W_0, already flattened via
            #   F0[o', o*d+i] = delta_{o,o'} * W_0[o, i].
            jjd0 = jnp.dot(st, f0_ref[...], preferred_element_type=jnp.float32)
            jflat = jjd0[:tile_n]
            jdflat = jjd0[tile_n:]
        else:
            # Lane-expand the diagonal scales: se[b, o*d+i] = s[b, o].
            ste = jnp.dot(st, exp_ref[...], preferred_element_type=jnp.float32)
            se = ste[:tile_n]
            te = ste[tile_n:]
            # Chain matmul (left-multiply by W_k) as a shared-RHS lane-dense
            # matmul with kron(W_k^T, I_d); J and Jd stacked on sublanes.
            jjd_in = jnp.concatenate([jflat, jdflat], axis=0)       # (2n, d2)
            wjjd = jnp.dot(jjd_in, kron_ref[k],
                           preferred_element_type=jnp.float32)      # (2n, d2)
            wj = wjjd[:tile_n]                                      # (W_k J)   flat
            wjd = wjjd[tile_n:]                                     # (W_k Jd)  flat
            jdflat = wjd * se + wj * te           # J_k Jd + Jd_k J
            jflat = wj * se                       # J_k J

        x, xd = y, yd

    y_ref[...] = x
    yd_ref[...] = xd
    # Single 128-lane (for d=8) output slab: [J_flat | Jd_flat].
    jjd_ref[...] = jnp.concatenate([jflat, jdflat], axis=-1)


def composed_taskmap_forward(x, xd, Ws, bs, *, tile_n=256):
    """ComposedTaskMap.composed_forward(x, xd, order=2) -> (y, yd, J, Jd)."""
    n, d = x.shape
    num_maps = Ws.shape[0]
    assert num_maps >= 1
    d2 = d * d
    f32 = jnp.float32

    x = x.astype(f32)
    xd = xd.astype(f32)
    Ws = Ws.astype(f32)
    bs = bs.astype(f32)

    # Pre-transposed weights (contraction on lanes inside the kernel).
    Wt = jnp.swapaxes(Ws, 1, 2)                                    # (K, d, d) = W_k^T
    eye = jnp.eye(d, dtype=f32)
    # kron(W_k^T, I_d): right-multiplying a row-major-flattened J applies W_k on the left.
    kron = (Wt[:, :, None, :, None] * eye[None, None, :, None, :]).reshape(num_maps, d2, d2)
    # Lane expander: (s @ expand)[b, o*d+i] = s[b, o].
    expand = jnp.repeat(eye, d, axis=1)                            # (d, d2)
    # Peeled first step: (s @ f0)[b, o*d+i] = s[b, o] * W_0[o, i].
    f0 = expand * Ws[0].reshape(1, d2)                             # (d, d2)

    # Batch tiling (pad the ragged tail so every tile is full; rows are independent).
    tile_n = max(8, (tile_n // 8) * 8)
    n_round = ((n + 7) // 8) * 8
    tile_n = min(tile_n, n_round)
    n_pad = ((n + tile_n - 1) // tile_n) * tile_n
    if n_pad != n:
        pad = ((0, n_pad - n), (0, 0))
        x_p = jnp.pad(x, pad)
        xd_p = jnp.pad(xd, pad)
    else:
        x_p, xd_p = x, xd

    grid = (n_pad // tile_n,)
    batch2 = lambda shape: pl.BlockSpec(shape, lambda i: (i, 0))
    const2 = lambda shape: pl.BlockSpec(shape, lambda i: (0, 0))
    const3 = lambda shape: pl.BlockSpec(shape, lambda i: (0, 0, 0))

    y, yd, jjd = pl.pallas_call(
        _composed_taskmap_kernel,
        out_shape=(
            jax.ShapeDtypeStruct((n_pad, d), f32),
            jax.ShapeDtypeStruct((n_pad, d), f32),
            jax.ShapeDtypeStruct((n_pad, 2 * d2), f32),
        ),
        grid_spec=pltpu.PrefetchScalarGridSpec(
            num_scalar_prefetch=0,
            grid=grid,
            in_specs=[
                batch2((tile_n, d)),            # x      (tiled over batch)
                batch2((tile_n, d)),            # xd
                const3((num_maps, d, d)),       # W^T    (resident across the grid)
                const2((num_maps, d)),          # b
                const3((num_maps, d2, d2)),     # kron(W^T, I)
                const2((d, d2)),                # expand
                const2((d, d2)),                # f0 (peeled first step)
            ],
            out_specs=(
                batch2((tile_n, d)),            # y
                batch2((tile_n, d)),            # yd
                batch2((tile_n, 2 * d2)),       # [J_flat | Jd_flat]
            ),
        ),
        compiler_params=pltpu.CompilerParams(
            dimension_semantics=("parallel",),
            vmem_limit_bytes=32 * 1024 * 1024,
        ),
    )(x_p, xd_p, Wt, bs, kron, expand, f0)

    y = y[:n]
    yd = yd[:n]
    J = jjd[:n, :d2].reshape(n, d, d)     # pure reshape, no transpose
    Jd = jjd[:n, d2:].reshape(n, d, d)
    return y, yd, J, Jd


def composed_taskmap_reference(x, xd, Ws, bs):
    """Pure-JAX transcription of ComposedTaskMap.composed_forward (order=2)."""
    n, d = x.shape
    J = jnp.broadcast_to(jnp.eye(d, dtype=jnp.float32), (n, d, d))
    Jd = jnp.zeros((n, d, d), jnp.float32)
    for k in range(Ws.shape[0]):
        W, b = Ws[k], bs[k]
        y = jnp.tanh(x @ W.T + b)
        s = 1.0 - y * y
        Ji = s[:, :, None] * W[None, :, :]            # J_k(x)
        yd = jnp.einsum('bi,boi->bo', xd, Ji)         # bmm(xd, J_k^T)
        t = -2.0 * y * yd
        Jdi = t[:, :, None] * W[None, :, :]           # Jd_k(x, xd)
        Jd = jnp.einsum('boi,bij->boj', Ji, Jd) + jnp.einsum('boi,bij->boj', Jdi, J)
        J = jnp.einsum('boi,bij->boj', Ji, J)
        x, xd = y, yd
    return x, xd, J, Jd


if __name__ == "__main__":
    n, d, num_maps = 80, 8, 3
    key = jax.random.PRNGKey(0)
    k1, k2, k3, k4 = jax.random.split(key, 4)
    x = jax.random.normal(k1, (n, d), jnp.float32)
    xd = jax.random.normal(k2, (n, d), jnp.float32)
    # deterministic synthetic taskmap parameters (K affine+tanh maps)
    Ws = jax.random.normal(k3, (num_maps, d, d), jnp.float32) / jnp.sqrt(d)
    bs = 0.1 * jax.random.normal(k4, (num_maps, d), jnp.float32)

    # small tile to exercise the batch grid (3 tiles) and the ragged-tail padding
    y, yd, J, Jd = jax.block_until_ready(
        composed_taskmap_forward(x, xd, Ws, bs, tile_n=32))

    yr, ydr, Jr, Jdr = composed_taskmap_reference(x, xd, Ws, bs)
    assert jnp.allclose(y, yr, atol=1e-5), "y mismatch"
    assert jnp.allclose(yd, ydr, atol=1e-5), "yd mismatch"
    assert jnp.allclose(J, Jr, atol=1e-5), "J mismatch"
    assert jnp.allclose(Jd, Jdr, atol=1e-5), "Jd mismatch"
    print("KERNEL_OK")
</pallas_src>

<mosaic_0001>
module attributes {stable_mosaic.version = 11 : i64} {
  func.func @_composed_taskmap_kernel(%arg0: i32, %arg1: memref<32x8xf32, #tpu.memory_space<vmem>>, %arg2: memref<32x8xf32, #tpu.memory_space<vmem>>, %arg3: memref<3x8x8xf32, #tpu.memory_space<vmem>>, %arg4: memref<3x8xf32, #tpu.memory_space<vmem>>, %arg5: memref<3x64x64xf32, #tpu.memory_space<vmem>>, %arg6: memref<8x64xf32, #tpu.memory_space<vmem>>, %arg7: memref<8x64xf32, #tpu.memory_space<vmem>>, %arg8: memref<32x8xf32, #tpu.memory_space<vmem>>, %arg9: memref<32x8xf32, #tpu.memory_space<vmem>>, %arg10: memref<32x128xf32, #tpu.memory_space<vmem>>) attributes {dimension_semantics = [#tpu.dimension_semantics<parallel>], iteration_bounds = array<i64: 3>, scalar_prefetch = 0 : i64, scratch_operands = 0 : i64, tpu.core_type = #tpu.core_type<tc>, window_params = [{transform_indices = @transform_0, window_bounds = array<i64: 32, 8>}, {transform_indices = @transform_1, window_bounds = array<i64: 32, 8>}, {pipeline_mode = #tpu.pipeline_mode<synchronous>, transform_indices = @transform_2, window_bounds = array<i64: 3, 8, 8>}, {pipeline_mode = #tpu.pipeline_mode<synchronous>, transform_indices = @transform_3, window_bounds = array<i64: 3, 8>}, {pipeline_mode = #tpu.pipeline_mode<synchronous>, transform_indices = @transform_4, window_bounds = array<i64: 3, 64, 64>}, {pipeline_mode = #tpu.pipeline_mode<synchronous>, transform_indices = @transform_5, window_bounds = array<i64: 8, 64>}, {pipeline_mode = #tpu.pipeline_mode<synchronous>, transform_indices = @transform_6, window_bounds = array<i64: 8, 64>}, {transform_indices = @transform_7, window_bounds = array<i64: 32, 8>}, {transform_indices = @transform_8, window_bounds = array<i64: 32, 8>}, {transform_indices = @transform_9, window_bounds = array<i64: 32, 128>}]} {
    %c0 = arith.constant 0 : index
    %c0_0 = arith.constant 0 : index
    %0 = vector.load %arg1[%c0, %c0_0] : memref<32x8xf32, #tpu.memory_space<vmem>>, vector<32x8xf32>
    %c0_1 = arith.constant 0 : index
    %c0_2 = arith.constant 0 : index
    %1 = vector.load %arg2[%c0_1, %c0_2] : memref<32x8xf32, #tpu.memory_space<vmem>>, vector<32x8xf32>
    %c0_3 = arith.constant 0 : index
    %c0_4 = arith.constant 0 : index
    %c0_5 = arith.constant 0 : index
    %2 = vector.load %arg3[%c0_3, %c0_4, %c0_5] : memref<3x8x8xf32, #tpu.memory_space<vmem>>, vector<1x8x8xf32>
    %3 = vector.shape_cast %2 : vector<1x8x8xf32> to vector<8x8xf32>
    %c0_6 = arith.constant 0 : index
    %c0_7 = arith.constant 0 : index
    %4 = vector.load %arg4[%c0_6, %c0_7] : memref<3x8xf32, #tpu.memory_space<vmem>>, vector<1x8xf32>
    %5 = tpu.concatenate %0, %1 in 0 : vector<32x8xf32>, vector<32x8xf32> -> vector<64x8xf32>
    %cst = arith.constant dense<0.000000e+00> : vector<64x8xf32>
    %6 = tpu.matmul %5, %3, %cst {dimension_numbers = #tpu.dot_dimension_numbers<[1], [0], [0], [1], [0, 0, 1, 1], [], []>} : vector<64x8xf32>, vector<8x8xf32>, vector<64x8xf32> -> vector<64x8xf32>
    %7 = vector.extract_strided_slice %6 {offsets = [0, 0], sizes = [32, 8], strides = [1, 1]} : vector<64x8xf32> to vector<32x8xf32>
    %8 = vector.broadcast %4 : vector<1x8xf32> to vector<32x8xf32>
    %9 = arith.addf %7, %8 : vector<32x8xf32>
    %10 = math.tanh %9 : vector<32x8xf32>
    %11 = arith.mulf %10, %10 : vector<32x8xf32>
    %cst_8 = arith.constant 1.000000e+00 : f32
    %12 = vector.broadcast %cst_8 : f32 to vector<32x8xf32>
    %13 = arith.subf %12, %11 : vector<32x8xf32>
    %14 = vector.extract_strided_slice %6 {offsets = [32, 0], sizes = [32, 8], strides = [1, 1]} : vector<64x8xf32> to vector<32x8xf32>
    %15 = arith.mulf %13, %14 : vector<32x8xf32>
    %cst_9 = arith.constant -2.000000e+00 : f32
    %16 = vector.broadcast %cst_9 : f32 to vector<32x8xf32>
    %17 = arith.mulf %16, %10 : vector<32x8xf32>
    %18 = arith.mulf %17, %15 : vector<32x8xf32>
    %19 = tpu.concatenate %13, %18 in 0 : vector<32x8xf32>, vector<32x8xf32> -> vector<64x8xf32>
    %c0_10 = arith.constant 0 : index
    %c0_11 = arith.constant 0 : index
    %20 = vector.load %arg7[%c0_10, %c0_11] : memref<8x64xf32, #tpu.memory_space<vmem>>, vector<8x64xf32>
    %cst_12 = arith.constant dense<0.000000e+00> : vector<64x64xf32>
    %21 = tpu.matmul %19, %20, %cst_12 {dimension_numbers = #tpu.dot_dimension_numbers<[1], [0], [0], [1], [0, 0, 1, 1], [], []>} : vector<64x8xf32>, vector<8x64xf32>, vector<64x64xf32> -> vector<64x64xf32>
    %22 = vector.extract_strided_slice %21 {offsets = [0, 0], sizes = [32, 64], strides = [1, 1]} : vector<64x64xf32> to vector<32x64xf32>
    %23 = vector.extract_strided_slice %21 {offsets = [32, 0], sizes = [32, 64], strides = [1, 1]} : vector<64x64xf32> to vector<32x64xf32>
    %c1 = arith.constant 1 : index
    %c0_13 = arith.constant 0 : index
    %c0_14 = arith.constant 0 : index
    %24 = vector.load %arg3[%c1, %c0_13, %c0_14] : memref<3x8x8xf32, #tpu.memory_space<vmem>>, vector<1x8x8xf32>
    %25 = vector.shape_cast %24 : vector<1x8x8xf32> to vector<8x8xf32>
    %c1_15 = arith.constant 1 : index
    %c0_16 = arith.constant 0 : index
    %26 = vector.load %arg4[%c1_15, %c0_16] : memref<3x8xf32, #tpu.memory_space<vmem>>, vector<1x8xf32>
    %27 = tpu.concatenate %10, %15 in 0 : vector<32x8xf32>, vector<32x8xf32> -> vector<64x8xf32>
    %cst_17 = arith.constant dense<0.000000e+00> : vector<64x8xf32>
    %28 = tpu.matmul %27, %25, %cst_17 {dimension_numbers = #tpu.dot_dimension_numbers<[1], [0], [0], [1], [0, 0, 1, 1], [], []>} : vector<64x8xf32>, vector<8x8xf32>, vector<64x8xf32> -> vector<64x8xf32>
    %29 = vector.extract_strided_slice %28 {offsets = [0, 0], sizes = [32, 8], strides = [1, 1]} : vector<64x8xf32> to vector<32x8xf32>
    %30 = vector.broadcast %26 : vector<1x8xf32> to vector<32x8xf32>
    %31 = arith.addf %29, %30 : vector<32x8xf32>
    %32 = math.tanh %31 : vector<32x8xf32>
    %33 = arith.mulf %32, %32 : vector<32x8xf32>
    %cst_18 = arith.constant 1.000000e+00 : f32
    %34 = vector.broadcast %cst_18 : f32 to vector<32x8xf32>
    %35 = arith.subf %34, %33 : vector<32x8xf32>
    %36 = vector.extract_strided_slice %28 {offsets = [32, 0], sizes = [32, 8], strides = [1, 1]} : vector<64x8xf32> to vector<32x8xf32>
    %37 = arith.mulf %35, %36 : vector<32x8xf32>
    %cst_19 = arith.constant -2.000000e+00 : f32
    %38 = vector.broadcast %cst_19 : f32 to vector<32x8xf32>
    %39 = arith.mulf %38, %32 : vector<32x8xf32>
    %40 = arith.mulf %39, %37 : vector<32x8xf32>
    %41 = tpu.concatenate %35, %40 in 0 : vector<32x8xf32>, vector<32x8xf32> -> vector<64x8xf32>
    %c0_20 = arith.constant 0 : index
    %c0_21 = arith.constant 0 : index
    %42 = vector.load %arg6[%c0_20, %c0_21] : memref<8x64xf32, #tpu.memory_space<vmem>>, vector<8x64xf32>
    %cst_22 = arith.constant dense<0.000000e+00> : vector<64x64xf32>
    %43 = tpu.matmul %41, %42, %cst_22 {dimension_numbers = #tpu.dot_dimension_numbers<[1], [0], [0], [1], [0, 0, 1, 1], [], []>} : vector<64x8xf32>, vector<8x64xf32>, vector<64x64xf32> -> vector<64x64xf32>
    %44 = vector.extract_strided_slice %43 {offsets = [0, 0], sizes = [32, 64], strides = [1, 1]} : vector<64x64xf32> to vector<32x64xf32>
    %45 = vector.extract_strided_slice %43 {offsets = [32, 0], sizes = [32, 64], strides = [1, 1]} : vector<64x64xf32> to vector<32x64xf32>
    %46 = tpu.concatenate %22, %23 in 0 : vector<32x64xf32>, vector<32x64xf32> -> vector<64x64xf32>
    %c1_23 = arith.constant 1 : index
    %c0_24 = arith.constant 0 : index
    %c0_25 = arith.constant 0 : index
    %47 = vector.load %arg5[%c1_23, %c0_24, %c0_25] : memref<3x64x64xf32, #tpu.memory_space<vmem>>, vector<1x64x64xf32>
    %48 = vector.shape_cast %47 : vector<1x64x64xf32> to vector<64x64xf32>
    %cst_26 = arith.constant dense<0.000000e+00> : vector<64x64xf32>
    %49 = tpu.matmul %46, %48, %cst_26 {dimension_numbers = #tpu.dot_dimension_numbers<[1], [0], [0], [1], [0, 0, 1, 1], [], []>} : vector<64x64xf32>, vector<64x64xf32>, vector<64x64xf32> -> vector<64x64xf32>
    %50 = vector.extract_strided_slice %49 {offsets = [0, 0], sizes = [32, 64], strides = [1, 1]} : vector<64x64xf32> to vector<32x64xf32>
    %51 = vector.extract_strided_slice %49 {offsets = [32, 0], sizes = [32, 64], strides = [1, 1]} : vector<64x64xf32> to vector<32x64xf32>
    %52 = arith.mulf %51, %44 : vector<32x64xf32>
    %53 = arith.mulf %50, %45 : vector<32x64xf32>
    %54 = arith.addf %52, %53 : vector<32x64xf32>
    %55 = arith.mulf %50, %44 : vector<32x64xf32>
    %c2 = arith.constant 2 : index
    %c0_27 = arith.constant 0 : index
    %c0_28 = arith.constant 0 : index
    %56 = vector.load %arg3[%c2, %c0_27, %c0_28] : memref<3x8x8xf32, #tpu.memory_space<vmem>>, vector<1x8x8xf32>
    %57 = vector.shape_cast %56 : vector<1x8x8xf32> to vector<8x8xf32>
    %c2_29 = arith.constant 2 : index
    %c0_30 = arith.constant 0 : index
    %58 = vector.load %arg4[%c2_29, %c0_30] : memref<3x8xf32, #tpu.memory_space<vmem>>, vector<1x8xf32>
    %59 = tpu.concatenate %32, %37 in 0 : vector<32x8xf32>, vector<32x8xf32> -> vector<64x8xf32>
    %cst_31 = arith.constant dense<0.000000e+00> : vector<64x8xf32>
    %60 = tpu.matmul %59, %57, %cst_31 {dimension_numbers = #tpu.dot_dimension_numbers<[1], [0], [0], [1], [0, 0, 1, 1], [], []>} : vector<64x8xf32>, vector<8x8xf32>, vector<64x8xf32> -> vector<64x8xf32>
    %61 = vector.extract_strided_slice %60 {offsets = [0, 0], sizes = [32, 8], strides = [1, 1]} : vector<64x8xf32> to vector<32x8xf32>
    %62 = vector.broadcast %58 : vector<1x8xf32> to vector<32x8xf32>
    %63 = arith.addf %61, %62 : vector<32x8xf32>
    %64 = math.tanh %63 : vector<32x8xf32>
    %65 = arith.mulf %64, %64 : vector<32x8xf32>
    %cst_32 = arith.constant 1.000000e+00 : f32
    %66 = vector.broadcast %cst_32 : f32 to vector<32x8xf32>
    %67 = arith.subf %66, %65 : vector<32x8xf32>
    %68 = vector.extract_strided_slice %60 {offsets = [32, 0], sizes = [32, 8], strides = [1, 1]} : vector<64x8xf32> to vector<32x8xf32>
    %69 = arith.mulf %67, %68 : vector<32x8xf32>
    %cst_33 = arith.constant -2.000000e+00 : f32
    %70 = vector.broadcast %cst_33 : f32 to vector<32x8xf32>
    %71 = arith.mulf %70, %64 : vector<32x8xf32>
    %72 = arith.mulf %71, %69 : vector<32x8xf32>
    %73 = tpu.concatenate %67, %72 in 0 : vector<32x8xf32>, vector<32x8xf32> -> vector<64x8xf32>
    %c0_34 = arith.constant 0 : index
    %c0_35 = arith.constant 0 : index
    %74 = vector.load %arg6[%c0_34, %c0_35] : memref<8x64xf32, #tpu.memory_space<vmem>>, vector<8x64xf32>
    %cst_36 = arith.constant dense<0.000000e+00> : vector<64x64xf32>
    %75 = tpu.matmul %73, %74, %cst_36 {dimension_numbers = #tpu.dot_dimension_numbers<[1], [0], [0], [1], [0, 0, 1, 1], [], []>} : vector<64x8xf32>, vector<8x64xf32>, vector<64x64xf32> -> vector<64x64xf32>
    %76 = vector.extract_strided_slice %75 {offsets = [0, 0], sizes = [32, 64], strides = [1, 1]} : vector<64x64xf32> to vector<32x64xf32>
    %77 = vector.extract_strided_slice %75 {offsets = [32, 0], sizes = [32, 64], strides = [1, 1]} : vector<64x64xf32> to vector<32x64xf32>
    %78 = tpu.concatenate %55, %54 in 0 : vector<32x64xf32>, vector<32x64xf32> -> vector<64x64xf32>
    %c2_37 = arith.constant 2 : index
    %c0_38 = arith.constant 0 : index
    %c0_39 = arith.constant 0 : index
    %79 = vector.load %arg5[%c2_37, %c0_38, %c0_39] : memref<3x64x64xf32, #tpu.memory_space<vmem>>, vector<1x64x64xf32>
    %80 = vector.shape_cast %79 : vector<1x64x64xf32> to vector<64x64xf32>
    %cst_40 = arith.constant dense<0.000000e+00> : vector<64x64xf32>
    %81 = tpu.matmul %78, %80, %cst_40 {dimension_numbers = #tpu.dot_dimension_numbers<[1], [0], [0], [1], [0, 0, 1, 1], [], []>} : vector<64x64xf32>, vector<64x64xf32>, vector<64x64xf32> -> vector<64x64xf32>
    %82 = vector.extract_strided_slice %81 {offsets = [0, 0], sizes = [32, 64], strides = [1, 1]} : vector<64x64xf32> to vector<32x64xf32>
    %83 = vector.extract_strided_slice %81 {offsets = [32, 0], sizes = [32, 64], strides = [1, 1]} : vector<64x64xf32> to vector<32x64xf32>
    %84 = arith.mulf %83, %76 : vector<32x64xf32>
    %85 = arith.mulf %82, %77 : vector<32x64xf32>
    %86 = arith.addf %84, %85 : vector<32x64xf32>
    %87 = arith.mulf %82, %76 : vector<32x64xf32>
    %c0_41 = arith.constant 0 : index
    %c0_42 = arith.constant 0 : index
    %88 = vector.load %arg8[%c0_41, %c0_42] : memref<32x8xf32, #tpu.memory_space<vmem>>, vector<32x8xf32>
    tpu.vector_store %arg8[%c0_41, %c0_42], %64 {strides = array<i32>} : memref<32x8xf32, #tpu.memory_space<vmem>>, vector<32x8xf32>,
    %c0_43 = arith.constant 0 : index
    %c0_44 = arith.constant 0 : index
    %89 = vector.load %arg9[%c0_43, %c0_44] : memref<32x8xf32, #tpu.memory_space<vmem>>, vector<32x8xf32>
    tpu.vector_store %arg9[%c0_43, %c0_44], %69 {strides = array<i32>} : memref<32x8xf32, #tpu.memory_space<vmem>>, vector<32x8xf32>,
    %90 = tpu.concatenate %87, %86 in 1 : vector<32x64xf32>, vector<32x64xf32> -> vector<32x128xf32>
    %c0_45 = arith.constant 0 : index
    %c0_46 = arith.constant 0 : index
    %91 = vector.load %arg10[%c0_45, %c0_46] : memref<32x128xf32, #tpu.memory_space<vmem>>, vector<32x128xf32>
    tpu.vector_store %arg10[%c0_45, %c0_46], %90 {strides = array<i32>} : memref<32x128xf32, #tpu.memory_space<vmem>>, vector<32x128xf32>,
    return
  }
  func.func @transform_0(%arg0: i32) -> (i32, i32) {
    %c0_i32 = arith.constant 0 : i32
    %c0_i32_0 = arith.constant 0 : i32
    return %arg0, %c0_i32 : i32, i32
  }
  func.func @transform_1(%arg0: i32) -> (i32, i32) {
    %c0_i32 = arith.constant 0 : i32
    %c0_i32_0 = arith.constant 0 : i32
    return %arg0, %c0_i32 : i32, i32
  }
  func.func @transform_2(%arg0: i32) -> (i32, i32, i32) {
    %c0_i32 = arith.constant 0 : i32
    %c0_i32_0 = arith.constant 0 : i32
    %c0_i32_1 = arith.constant 0 : i32
    %c0_i32_2 = arith.constant 0 : i32
    return %c0_i32, %c0_i32_0, %c0_i32_1 : i32, i32, i32
  }
  func.func @transform_3(%arg0: i32) -> (i32, i32) {
    %c0_i32 = arith.constant 0 : i32
    %c0_i32_0 = arith.constant 0 : i32
    %c0_i32_1 = arith.constant 0 : i32
    return %c0_i32, %c0_i32_0 : i32, i32
  }
  func.func @transform_4(%arg0: i32) -> (i32, i32, i32) {
    %c0_i32 = arith.constant 0 : i32
    %c0_i32_0 = arith.constant 0 : i32
    %c0_i32_1 = arith.constant 0 : i32
    %c0_i32_2 = arith.constant 0 : i32
    return %c0_i32, %c0_i32_0, %c0_i32_1 : i32, i32, i32
  }
  func.func @transform_5(%arg0: i32) -> (i32, i32) {
    %c0_i32 = arith.constant 0 : i32
    %c0_i32_0 = arith.constant 0 : i32
    %c0_i32_1 = arith.constant 0 : i32
    return %c0_i32, %c0_i32_0 : i32, i32
  }
  func.func @transform_6(%arg0: i32) -> (i32, i32) {
    %c0_i32 = arith.constant 0 : i32
    %c0_i32_0 = arith.constant 0 : i32
    %c0_i32_1 = arith.constant 0 : i32
    return %c0_i32, %c0_i32_0 : i32, i32
  }
  func.func @transform_7(%arg0: i32) -> (i32, i32) {
    %c0_i32 = arith.constant 0 : i32
    %c0_i32_0 = arith.constant 0 : i32
    return %arg0, %c0_i32 : i32, i32
  }
  func.func @transform_8(%arg0: i32) -> (i32, i32) {
    %c0_i32 = arith.constant 0 : i32
    %c0_i32_0 = arith.constant 0 : i32
    return %arg0, %c0_i32 : i32, i32
  }
  func.func @transform_9(%arg0: i32) -> (i32, i32) {
    %c0_i32 = arith.constant 0 : i32
    %c0_i32_0 = arith.constant 0 : i32
    return %arg0, %c0_i32 : i32, i32
  }
}

</mosaic_0001>

<llo_original>
// kernel: tpu_custom_call.1
$region0: #{tpu_custom_call.1}
  #allocation0 [shape = 'u32[]', space=smem, size = 0x4, offset = 0x4, fixed_abs, tag = 'smem constant byte address 0x4 - core index']
  #allocation1 [shape = 'u32[72,128]{1,0:T(1,128)}', space=vmem, size = 0x9000, scoped, tag = 'internal scratch']
  %s0 = inlined_call_operand.vmem [shape: f32[96,8], index: 0, kind: input, shape index: {}]
  %s1 = inlined_call_operand.vmem [shape: f32[96,8], index: 1, kind: input, shape index: {}]
  %s2 = inlined_call_operand.hbm [shape: f32[3,8,8], index: 2, kind: input, shape index: {}]
  %s3 = inlined_call_operand.hbm [shape: f32[3,8], index: 3, kind: input, shape index: {}]
  %s4 = inlined_call_operand.vmem [shape: f32[3,64,64], index: 4, kind: input, shape index: {}]
  %s5 = inlined_call_operand.vmem [shape: f32[8,64], index: 5, kind: input, shape index: {}]
  %s6 = inlined_call_operand.hbm [shape: f32[8,64], index: 6, kind: input, shape index: {}]
  %s7 = inlined_call_operand.vmem [shape: f32[96,8], index: 7, kind: output, shape index: {0}]
  %s8 = inlined_call_operand.vmem [shape: f32[96,8], index: 8, kind: output, shape index: {1}]
  %s9 = inlined_call_operand.hbm [shape: f32[96,128], index: 9, kind: output, shape index: {2}]
  %10 = xla_tuple %s7, %s8, %s9
  %s11 = sld [smem:[#allocation0]]
  $region89: #{tpu_custom_call.1} parent=0
    _
  %s13 = ssub.s32 1, %s11
  %s14 = scalar_select 0, %s13, %s11
  $region1: #{tpu_custom_call.1} parent=0
    #allocation2 [shape = 'u8[12288]{0}', space=vmem, size = 0x3000, scoped, tag = 'input window, operand 2, single buffered']
    #allocation3 [shape = 's32[2]{0}', space=sflag, size = 0x8, scoped, tag = 'scoped memory for tpu_custom_call.1']
    #allocation4 [shape = 's32[2]{0}', space=sflag, size = 0x8, scoped, tag = 'scoped memory for tpu_custom_call.1']
    #allocation5 [shape = 'u8[2048]{0}', space=vmem, size = 0x800, scoped, tag = 'input window, operand 3, single buffered']
    #allocation6 [shape = 's32[1]{0}', space=sflag, size = 0x4, scoped, tag = 'scoped memory for tpu_custom_call.1']
    #allocation7 [shape = 'u8[4096]{0}', space=vmem, size = 0x1000, scoped, tag = 'input window, operand 6, single buffered']
    #allocation8 [shape = 'u8[32768]{0}', space=vmem, size = 0x8000, scoped, tag = 'output window, operand 2']
    %15 = vsyncpa [#allocation3], 0
    %16 = vsyncpa [#allocation6], 0
    %17 = vsyncpa [#allocation4], 0
    %s18 = scalar_lea.sflag [#allocation4], 1
    %19 = vsyncpa %s18, 0
    loop: start=0, step=1, limit=5
    $region2: #{tpu_custom_call.1} parent=1 // loop_pre_header
      _
    $region3: #{tpu_custom_call.1} parent=1 // loop_header
      %s21 = sphi 0, %s25
      %p22 = scmp.ge.s32.totalorder %s21, 5
      %s31 = sphi 0, %s33
      %s34 = sphi 0, %s31
      %s35 = sphi 0, %s34
      %s51 = sphi 0, %s35
      %s57 = sphi 0, %s59
      %s60 = sphi 0, %s57
      %s61 = sphi 0, %s60
      %s77 = sphi 0, %s61
      %s81 = sphi 0, %s81
      %s83 = sphi 0, %s81
      %s84 = sphi 0, %s83
      %s98 = sphi 0, %s84
      %s102 = sphi 0, %s102
      %s104 = sphi 0, %s102
      %s105 = sphi 0, %s104
      %s119 = sphi 0, %s105
      %s123 = sphi 0, %s123
      %s125 = sphi 0, %s123
      %s126 = sphi 0, %s125
      %s140 = sphi 0, %s126
      %s144 = sphi 0, %s144
      %s146 = sphi 0, %s144
      %s147 = sphi 0, %s146
      %s161 = sphi 0, %s147
      %s165 = sphi 0, %s165
      %s167 = sphi 0, %s165
      %s168 = sphi 0, %s167
      %s182 = sphi 0, %s168
      %s188 = sphi 0, %s190
      %s191 = sphi 0, %s188
      %s192 = sphi 0, %s191
      %s208 = sphi 0, %s192
      %s214 = sphi 0, %s216
      %s217 = sphi 0, %s214
      %s218 = sphi 0, %s217
      %s234 = sphi 0, %s218
      %s240 = sphi 0, %s242
      %s243 = sphi 0, %s240
      %s244 = sphi 0, %s243
      %s260 = sphi 0, %s244
    $region4: #{tpu_custom_call.1} parent=1 // loop_header_branch
      %24 = sbr.rel (%p22) target = $region8
    $region5: #{tpu_custom_call.1} parent=1 // loop_body
      %s26 = ssub.s32 %s21, 1
      %s27 = ssub.s32 %s21, 2
      %s28 = sadd.s32 %s21, 1
      %s29 = ssub.s32 %s21, %s28
      %p30 = scmp.eq.s32.totalorder %s29, 0
      %s32 = sadd.s32 %s31, 1
      %s33 = scalar_select %p30, %s31, %s32
      %p36 = pneg %p30
      %p37 = scmp.eq.s32.totalorder %s21, 2
      %p38 = por %p36, %p37
      %p39 = scmp.ne.s32.totalorder %s31, %s34
      %p40 = scmp.eq.s32.totalorder %s21, 0
      %p41 = por %p39, %p40
      %p42 = scmp.ne.s32.totalorder %s31, %s34
      %p43 = scmp.eq.s32.totalorder %s26, 2
      %p44 = por %p42, %p43
      %p45 = scmp.ne.s32.totalorder %s34, %s35
      %p46 = scmp.eq.s32.totalorder %s26, 0
      %p47 = por %p45, %p46
      %p48 = scmp.ne.s32.totalorder %s34, %s35
      %p49 = scmp.eq.s32.totalorder %s27, 2
      %p50 = por %p48, %p49
      %p52 = scmp.ne.s32.totalorder %s35, %s51
      %p53 = scmp.eq.s32.totalorder %s27, 0
      %p54 = por %p52, %p53
      %s55 = ssub.s32 %s21, %s28
      %p56 = scmp.eq.s32.totalorder %s55, 0
      %s58 = sadd.s32 %s57, 1
      %s59 = scalar_select %p56, %s57, %s58
      %p62 = pneg %p56
      %p63 = scmp.eq.s32.totalorder %s21, 2
      %p64 = por %p62, %p63
      %p65 = scmp.ne.s32.totalorder %s57, %s60
      %p66 = scmp.eq.s32.totalorder %s21, 0
      %p67 = por %p65, %p66
      %p68 = scmp.ne.s32.totalorder %s57, %s60
      %p69 = scmp.eq.s32.totalorder %s26, 2
      %p70 = por %p68, %p69
      %p71 = scmp.ne.s32.totalorder %s60, %s61
      %p72 = scmp.eq.s32.totalorder %s26, 0
      %p73 = por %p71, %p72
      %p74 = scmp.ne.s32.totalorder %s60, %s61
      %p75 = scmp.eq.s32.totalorder %s27, 2
      %p76 = por %p74, %p75
      %p78 = scmp.ne.s32.totalorder %s61, %s77
      %p79 = scmp.eq.s32.totalorder %s27, 0
      %p80 = por %p78, %p79
      %s82 = sadd.s32 %s81, 1
      %p85 = scmp.eq.s32.totalorder %s21, 2
      %p86 = scmp.ne.s32.totalorder %s81, %s83
      %p87 = scmp.eq.s32.totalorder %s21, 0
      %p88 = por %p86, %p87
      %p89 = scmp.ne.s32.totalorder %s81, %s83
      %p90 = scmp.eq.s32.totalorder %s26, 2
      %p91 = por %p89, %p90
      %p92 = scmp.ne.s32.totalorder %s83, %s84
      %p93 = scmp.eq.s32.totalorder %s26, 0
      %p94 = por %p92, %p93
      %p95 = scmp.ne.s32.totalorder %s83, %s84
      %p96 = scmp.eq.s32.totalorder %s27, 2
      %p97 = por %p95, %p96
      %p99 = scmp.ne.s32.totalorder %s84, %s98
      %p100 = scmp.eq.s32.totalorder %s27, 0
      %p101 = por %p99, %p100
      %s103 = sadd.s32 %s102, 1
      %p106 = scmp.eq.s32.totalorder %s21, 2
      %p107 = scmp.ne.s32.totalorder %s102, %s104
      %p108 = scmp.eq.s32.totalorder %s21, 0
      %p109 = por %p107, %p108
      %p110 = scmp.ne.s32.totalorder %s102, %s104
      %p111 = scmp.eq.s32.totalorder %s26, 2
      %p112 = por %p110, %p111
      %p113 = scmp.ne.s32.totalorder %s104, %s105
      %p114 = scmp.eq.s32.totalorder %s26, 0
      %p115 = por %p113, %p114
      %p116 = scmp.ne.s32.totalorder %s104, %s105
      %p117 = scmp.eq.s32.totalorder %s27, 2
      %p118 = por %p116, %p117
      %p120 = scmp.ne.s32.totalorder %s105, %s119
      %p121 = scmp.eq.s32.totalorder %s27, 0
      %p122 = por %p120, %p121
      %s124 = sadd.s32 %s123, 1
      %p127 = scmp.eq.s32.totalorder %s21, 2
      %p128 = scmp.ne.s32.totalorder %s123, %s125
      %p129 = scmp.eq.s32.totalorder %s21, 0
      %p130 = por %p128, %p129
      %p131 = scmp.ne.s32.totalorder %s123, %s125
      %p132 = scmp.eq.s32.totalorder %s26, 2
      %p133 = por %p131, %p132
      %p134 = scmp.ne.s32.totalorder %s125, %s126
      %p135 = scmp.eq.s32.totalorder %s26, 0
      %p136 = por %p134, %p135
      %p137 = scmp.ne.s32.totalorder %s125, %s126
      %p138 = scmp.eq.s32.totalorder %s27, 2
      %p139 = por %p137, %p138
      %p141 = scmp.ne.s32.totalorder %s126, %s140
      %p142 = scmp.eq.s32.totalorder %s27, 0
      %p143 = por %p141, %p142
      %s145 = sadd.s32 %s144, 1
      %p148 = scmp.eq.s32.totalorder %s21, 2
      %p149 = scmp.ne.s32.totalorder %s144, %s146
      %p150 = scmp.eq.s32.totalorder %s21, 0
      %p151 = por %p149, %p150
      %p152 = scmp.ne.s32.totalorder %s144, %s146
      %p153 = scmp.eq.s32.totalorder %s26, 2
      %p154 = por %p152, %p153
      %p155 = scmp.ne.s32.totalorder %s146, %s147
      %p156 = scmp.eq.s32.totalorder %s26, 0
      %p157 = por %p155, %p156
      %p158 = scmp.ne.s32.totalorder %s146, %s147
      %p159 = scmp.eq.s32.totalorder %s27, 2
      %p160 = por %p158, %p159
      %p162 = scmp.ne.s32.totalorder %s147, %s161
      %p163 = scmp.eq.s32.totalorder %s27, 0
      %p164 = por %p162, %p163
      %s166 = sadd.s32 %s165, 1
      %p169 = scmp.eq.s32.totalorder %s21, 2
      %p170 = scmp.ne.s32.totalorder %s165, %s167
      %p171 = scmp.eq.s32.totalorder %s21, 0
      %p172 = por %p170, %p171
      %p173 = scmp.ne.s32.totalorder %s165, %s167
      %p174 = scmp.eq.s32.totalorder %s26, 2
      %p175 = por %p173, %p174
      %p176 = scmp.ne.s32.totalorder %s167, %s168
      %p177 = scmp.eq.s32.totalorder %s26, 0
      %p178 = por %p176, %p177
      %p179 = scmp.ne.s32.totalorder %s167, %s168
      %p180 = scmp.eq.s32.totalorder %s27, 2
      %p181 = por %p179, %p180
      %p183 = scmp.ne.s32.totalorder %s168, %s182
      %p184 = scmp.eq.s32.totalorder %s27, 0
      %p185 = por %p183, %p184
      %s186 = ssub.s32 %s21, %s28
      %p187 = scmp.eq.s32.totalorder %s186, 0
      %s189 = sadd.s32 %s188, 1
      %s190 = scalar_select %p187, %s188, %s189
      %p193 = pneg %p187
      %p194 = scmp.eq.s32.totalorder %s21, 2
      %p195 = por %p193, %p194
      %p196 = scmp.ne.s32.totalorder %s188, %s191
      %p197 = scmp.eq.s32.totalorder %s21, 0
      %p198 = por %p196, %p197
      %p199 = scmp.ne.s32.totalorder %s188, %s191
      %p200 = scmp.eq.s32.totalorder %s26, 2
      %p201 = por %p199, %p200
      %p202 = scmp.ne.s32.totalorder %s191, %s192
      %p203 = scmp.eq.s32.totalorder %s26, 0
      %p204 = por %p202, %p203
      %p205 = scmp.ne.s32.totalorder %s191, %s192
      %p206 = scmp.eq.s32.totalorder %s27, 2
      %p207 = por %p205, %p206
      %p209 = scmp.ne.s32.totalorder %s192, %s208
      %p210 = scmp.eq.s32.totalorder %s27, 0
      %p211 = por %p209, %p210
      %s212 = ssub.s32 %s21, %s28
      %p213 = scmp.eq.s32.totalorder %s212, 0
      %s215 = sadd.s32 %s214, 1
      %s216 = scalar_select %p213, %s214, %s215
      %p219 = pneg %p213
      %p220 = scmp.eq.s32.totalorder %s21, 2
      %p221 = por %p219, %p220
      %p222 = scmp.ne.s32.totalorder %s214, %s217
      %p223 = scmp.eq.s32.totalorder %s21, 0
      %p224 = por %p222, %p223
      %p225 = scmp.ne.s32.totalorder %s214, %s217
      %p226 = scmp.eq.s32.totalorder %s26, 2
      %p227 = por %p225, %p226
      %p228 = scmp.ne.s32.totalorder %s217, %s218
      %p229 = scmp.eq.s32.totalorder %s26, 0
      %p230 = por %p228, %p229
      %p231 = scmp.ne.s32.totalorder %s217, %s218
      %p232 = scmp.eq.s32.totalorder %s27, 2
      %p233 = por %p231, %p232
      %p235 = scmp.ne.s32.totalorder %s218, %s234
      %p236 = scmp.eq.s32.totalorder %s27, 0
      %p237 = por %p235, %p236
      %s238 = ssub.s32 %s21, %s28
      %p239 = scmp.eq.s32.totalorder %s238, 0
      %s241 = sadd.s32 %s240, 1
      %s242 = scalar_select %p239, %s240, %s241
      %p245 = pneg %p239
      %p246 = scmp.eq.s32.totalorder %s21, 2
      %p247 = por %p245, %p246
      %p248 = scmp.ne.s32.totalorder %s240, %s243
      %p249 = scmp.eq.s32.totalorder %s21, 0
      %p250 = por %p248, %p249
      %p251 = scmp.ne.s32.totalorder %s240, %s243
      %p252 = scmp.eq.s32.totalorder %s26, 2
      %p253 = por %p251, %p252
      %p254 = scmp.ne.s32.totalorder %s243, %s244
      %p255 = scmp.eq.s32.totalorder %s26, 0
      %p256 = por %p254, %p255
      %p257 = scmp.ne.s32.totalorder %s243, %s244
      %p258 = scmp.eq.s32.totalorder %s27, 2
      %p259 = por %p257, %p258
      %p261 = scmp.ne.s32.totalorder %s244, %s260
      %p262 = scmp.eq.s32.totalorder %s27, 0
      %p263 = por %p261, %p262
      %p264 = scmp.le.s32.totalorder 1, %s21
      %p265 = scmp.lt.s32.totalorder %s21, 4
      %p266 = pnand %p264, %p265
      %p267 = pneg %p266
      // Predicated region
      $region9: #{tpu_custom_call.1} parent=5 // pred_check
        _
      $region10: #{tpu_custom_call.1} parent=5 // pred_check_branch
        %269 = sbr.rel (%p266) target = $region12
      $region11: #{tpu_custom_call.1} parent=5 // pred_region
        %s270 = ssub.s32 %s21, 1
        // Predicated region
        $region13: #{tpu_custom_call.1} parent=11 // pred_check
          %p271 = pneg %p94
        $region14: #{tpu_custom_call.1} parent=11 // pred_check_branch
          %273 = sbr.rel (%p271) target = $region16
        $region15: #{tpu_custom_call.1} parent=11 // pred_region
          %275 = vsyncadd [#allocation3], 0
          %s276 = sshll.u32 %s2, 4
          %s277 = int_to_ptr.hbm [resolvable:$true] %s276
          %s278 = sshll.u32 [#allocation2], 4
          %s279 = int_to_ptr.vmem [resolvable:$true] %s278
          %284 = dma.hbm_to_vmem [thread:$0]  %s277, 384, %s279, [#allocation3], 128, 128, 8
        $region16: #{tpu_custom_call.1} parent=11 // pred_fallthru
          _
        // Predicated region
        $region17: #{tpu_custom_call.1} parent=11 // pred_check
          %p285 = pneg %p115
        $region18: #{tpu_custom_call.1} parent=11 // pred_check_branch
          %287 = sbr.rel (%p285) target = $region20
        $region19: #{tpu_custom_call.1} parent=11 // pred_region
          %289 = vsyncadd [#allocation6], 0
          %s291 = sshll.u32 %s3, 4
          %s292 = int_to_ptr.hbm [resolvable:$true] %s291
          %s293 = sshll.u32 [#allocation5], 4
          %s294 = int_to_ptr.vmem [resolvable:$true] %s293
          %296 = dma.hbm_to_vmem [thread:$0]  %s292, 64, %s294, [#allocation6]
        $region20: #{tpu_custom_call.1} parent=11 // pred_fallthru
          _
        // Predicated region
        $region21: #{tpu_custom_call.1} parent=11 // pred_check
          %p297 = pneg %p136
        $region22: #{tpu_custom_call.1} parent=11 // pred_check_branch
          %299 = sbr.rel (%p297) target = $region24
        $region23: #{tpu_custom_call.1} parent=11 // pred_region
          _
        $region24: #{tpu_custom_call.1} parent=11 // pred_fallthru
          _
        // Predicated region
        $region25: #{tpu_custom_call.1} parent=11 // pred_check
          %p300 = pneg %p157
        $region26: #{tpu_custom_call.1} parent=11 // pred_check_branch
          %302 = sbr.rel (%p300) target = $region28
        $region27: #{tpu_custom_call.1} parent=11 // pred_region
          _
        $region28: #{tpu_custom_call.1} parent=11 // pred_fallthru
          _
        // Predicated region
        $region29: #{tpu_custom_call.1} parent=11 // pred_check
          %p303 = pneg %p178
        $region30: #{tpu_custom_call.1} parent=11 // pred_check_branch
          %305 = sbr.rel (%p303) target = $region32
        $region31: #{tpu_custom_call.1} parent=11 // pred_region
          %307 = vsyncadd [#allocation6], 0
          %s309 = sshll.u32 %s6, 4
          %s310 = int_to_ptr.hbm [resolvable:$true] %s309
          %s311 = sshll.u32 [#allocation7], 4
          %s312 = int_to_ptr.vmem [resolvable:$true] %s311
          %314 = dma.hbm_to_vmem [thread:$0]  %s310, 128, %s312, [#allocation6]
        $region32: #{tpu_custom_call.1} parent=11 // pred_fallthru
          _
      $region12: #{tpu_custom_call.1} parent=5 // pred_fallthru
        _
      %p315 = scmp.lt.s32.totalorder %s21, 3
      // Predicated region
      $region33: #{tpu_custom_call.1} parent=5 // pred_check
        %p316 = pneg %p315
      $region34: #{tpu_custom_call.1} parent=5 // pred_check_branch
        %318 = sbr.rel (%p316) target = $region36
      $region35: #{tpu_custom_call.1} parent=5 // pred_region
        // Predicated region
        $region37: #{tpu_custom_call.1} parent=35 // pred_check
          %p319 = pneg %p41
        $region38: #{tpu_custom_call.1} parent=35 // pred_check_branch
          %321 = sbr.rel (%p319) target = $region40
        $region39: #{tpu_custom_call.1} parent=35 // pred_region
          %s322 = smul.u32 4, %s21
          %p323 = scmp.lt.s32.totalorder %s322, 11
          %s324 = scalar_select %p323, %s322, 11
          %s325 = smul.addr %s324, 8
          %s326 = scalar_lea.vmem %s0, %s325
          %s327 = smul.u32 4, %s21
        $region40: #{tpu_custom_call.1} parent=35 // pred_fallthru
          _
        // Predicated region
        $region41: #{tpu_custom_call.1} parent=35 // pred_check
          %p328 = pneg %p67
        $region42: #{tpu_custom_call.1} parent=35 // pred_check_branch
          %330 = sbr.rel (%p328) target = $region44
        $region43: #{tpu_custom_call.1} parent=35 // pred_region
          %s331 = smul.u32 4, %s21
          %p332 = scmp.lt.s32.totalorder %s331, 11
          %s333 = scalar_select %p332, %s331, 11
          %s334 = smul.addr %s333, 8
          %s335 = scalar_lea.vmem %s1, %s334
          %s336 = smul.u32 4, %s21
        $region44: #{tpu_custom_call.1} parent=35 // pred_fallthru
          _
      $region36: #{tpu_custom_call.1} parent=5 // pred_fallthru
        _
      %p337 = scmp.le.s32.totalorder 1, %s21
      %p338 = scmp.lt.s32.totalorder %s21, 4
      %p339 = pnand %p337, %p338
      %p340 = pneg %p339
      // Predicated region
      $region45: #{tpu_custom_call.1} parent=5 // pred_check
        _
      $region46: #{tpu_custom_call.1} parent=5 // pred_check_branch
        %342 = sbr.rel (%p339) target = $region48
      $region47: #{tpu_custom_call.1} parent=5 // pred_region
        %s343 = ssub.s32 %s21, 1
        // Predicated region
        $region49: #{tpu_custom_call.1} parent=47 // pred_check
          %p344 = pneg %p94
        $region50: #{tpu_custom_call.1} parent=47 // pred_check_branch
          %346 = sbr.rel (%p344) target = $region52
        $region51: #{tpu_custom_call.1} parent=47 // pred_region
          %348 = dma.done [#allocation3], 384
        $region52: #{tpu_custom_call.1} parent=47 // pred_fallthru
          _
        // Predicated region
        $region53: #{tpu_custom_call.1} parent=47 // pred_check
          %p349 = pneg %p115
        $region54: #{tpu_custom_call.1} parent=47 // pred_check_branch
          %351 = sbr.rel (%p349) target = $region56
        $region55: #{tpu_custom_call.1} parent=47 // pred_region
          %353 = dma.done [#allocation6], 64
        $region56: #{tpu_custom_call.1} parent=47 // pred_fallthru
          _
        // Predicated region
        $region57: #{tpu_custom_call.1} parent=47 // pred_check
          %p354 = pneg %p178
        $region58: #{tpu_custom_call.1} parent=47 // pred_check_branch
          %356 = sbr.rel (%p354) target = $region60
        $region59: #{tpu_custom_call.1} parent=47 // pred_region
          %358 = dma.done [#allocation6], 128
        $region60: #{tpu_custom_call.1} parent=47 // pred_fallthru
          _
        %s359 = smul.u32 4, %s26
        %p360 = scmp.lt.s32.totalorder %s359, 11
        %s361 = scalar_select %p360, %s359, 11
        %s362 = smul.addr %s361, 8
        %s363 = scalar_lea.vmem %s0, %s362
        %p364 = pneg %p47
        %p365 = pneg %p44
        %s366 = smul.u32 4, %s26
        %p367 = scmp.lt.s32.totalorder %s366, 11
        %s368 = scalar_select %p367, %s366, 11
        %s369 = smul.addr %s368, 8
        %s370 = scalar_lea.vmem %s1, %s369
        %p371 = pneg %p73
        %p372 = pneg %p70
        %p373 = pneg %p94
        %p374 = pneg %p91
        %p375 = pneg %p115
        %p376 = pneg %p112
        %p377 = pneg %p136
        %p378 = pneg %p133
        %p379 = pneg %p157
        %p380 = pneg %p154
        %p381 = pneg %p178
        %p382 = pneg %p175
        %p383 = pneg %p204
        %p384 = pneg %p201
        %s385 = smul.u32 4, %s26
        %p386 = scmp.lt.s32.totalorder %s385, 11
        %s387 = scalar_select %p386, %s385, 11
        %s388 = smul.addr %s387, 8
        %s389 = scalar_lea.vmem %s7, %s388
        %p390 = pneg %p230
        %p391 = pneg %p227
        %s392 = smul.u32 4, %s26
        %p393 = scmp.lt.s32.totalorder %s392, 11
        %s394 = scalar_select %p393, %s392, 11
        %s395 = smul.addr %s394, 8
        %s396 = scalar_lea.vmem %s8, %s395
        %p397 = pneg %p256
        %p398 = pneg %p253
        %s399 = sand.u32 %s243, 1
        %s400 = scalar_lea.sflag [#allocation4], %s399
        %s401 = sand.u32 %s243, 1
        %s402 = smul.addr %s401, 32
        %s403 = scalar_lea.vmem [#allocation8], %s402
        %s404 = smul.u32 4, %s26
        %p405 = scmp.lt.s32.totalorder %s404, 11
        %s406 = scalar_select %p405, %s404, 11
        %s407 = smul.addr %s406, 8
        %s408 = scalar_lea.vmem %s0, %s407
        %s409 = smul.u32 4, %s26
        %s410 = smul.u32 4, %s26
        %p411 = scmp.lt.s32.totalorder %s410, 11
        %s412 = scalar_select %p411, %s410, 11
        %s413 = smul.addr %s412, 8
        %s414 = scalar_lea.vmem %s1, %s413
        %s415 = smul.u32 4, %s26
        %s416 = smul.u32 4, %s26
        %p417 = scmp.lt.s32.totalorder %s416, 11
        %s418 = scalar_select %p417, %s416, 11
        %s419 = smul.addr %s418, 8
        %s420 = scalar_lea.vmem %s7, %s419
        %s421 = smul.u32 4, %s26
        %s422 = smul.u32 4, %s26
        %p423 = scmp.lt.s32.totalorder %s422, 11
        %s424 = scalar_select %p423, %s422, 11
        %s425 = smul.addr %s424, 8
        %s426 = scalar_lea.vmem %s8, %s425
        %s427 = smul.u32 4, %s26
        %s428 = smul.u32 4, %s26
        %v429 = vld [vmem:[%s408] sm:$0xff]
        %v430 = vld [vmem:[%s408 + $0x8] sm:$0xff]
        %v431 = vld [vmem:[%s408 + $0x10] sm:$0xff]
        %v432 = vld [vmem:[%s408 + $0x18] sm:$0xff]
        %v433 = vld [vmem:[%s414] sm:$0xff]
        %v434 = vld [vmem:[%s414 + $0x8] sm:$0xff]
        %v435 = vld [vmem:[%s414 + $0x10] sm:$0xff]
        %v436 = vld [vmem:[%s414 + $0x18] sm:$0xff]
        %v437 = vld [vmem:[#allocation2] sm:$0xff]
        %v438 = vld [vmem:[#allocation5] sm:$0x1]
        %vm439 = vcmask 64512
        %v441 = vsel %vm439, %v429, 0
        %v444 = vsel %vm439, %v430, 0
        %v447 = vsel %vm439, %v431, 0
        %v450 = vsel %vm439, %v432, 0
        %v453 = vsel %vm439, %v433, 0
        %v456 = vsel %vm439, %v434, 0
        %v459 = vsel %vm439, %v435, 0
        %v462 = vsel %vm439, %v436, 0
        %464 = vmatpush.msra.mxu0 0.0
        %465 = vmatpush.msra.mxu0 0.0
        %466 = vmatpush.msra.mxu0 0.0
        %467 = vmatpush.msra.mxu0 0.0
        %468 = vmatpush.msra.mxu0 0.0
        %469 = vmatpush.msra.mxu0 0.0
        %470 = vmatpush.msra.mxu0 0.0
        %471 = vmatpush.msra.mxu0 0.0
        %472 = vmatpush.msra.mxu0 0.0
        %473 = vmatpush.msra.mxu0 0.0
        %474 = vmatpush.msra.mxu0 0.0
        %475 = vmatpush.msra.mxu0 0.0
        %476 = vmatpush.msra.mxu0 0.0
        %477 = vmatpush.msra.mxu0 0.0
        %478 = vmatpush.msra.mxu0 0.0
        %479 = vmatpush.msra.mxu0 %v437
        %480 = vmatmul.f32.gmra.mxu0 %v441
        %v481 = vpop.f32.mrf.mxu0
        %v482 = vadd.f32 0.0, %v481
        %483 = vmatmul.f32.gmra.mxu0 %v444
        %v484 = vpop.f32.mrf.mxu0
        %v485 = vadd.f32 0.0, %v484
        %486 = vmatmul.f32.gmra.mxu0 %v447
        %v487 = vpop.f32.mrf.mxu0
        %v488 = vadd.f32 0.0, %v487
        %489 = vmatmul.f32.gmra.mxu0 %v450
        %v490 = vpop.f32.mrf.mxu0
        %v491 = vadd.f32 0.0, %v490
        %492 = vmatmul.f32.gmra.mxu0 %v453
        %v493 = vpop.f32.mrf.mxu0
        %v494 = vadd.f32 0.0, %v493
        %495 = vmatmul.f32.gmra.mxu0 %v456
        %v496 = vpop.f32.mrf.mxu0
        %v497 = vadd.f32 0.0, %v496
        %498 = vmatmul.f32.gmra.mxu0 %v459
        %v499 = vpop.f32.mrf.mxu0
        %v500 = vadd.f32 0.0, %v499
        %501 = vmatmul.f32.gmra.mxu0 %v462
        %v502 = vpop.f32.mrf.mxu0
        %v503 = vadd.f32 0.0, %v502
        %504 = vdwg.mxu0
        %v505 = vperm.slane %v438, 0
        %v506 = vadd.f32 %v482, %v505
        %v507 = vadd.f32 %v485, %v505
        %v508 = vadd.f32 %v488, %v505
        %v509 = vadd.f32 %v491, %v505
        %v510 = vtanh.pop %v506
        %v511 = vtanh.pop %v507
        %v512 = vtanh.pop %v508
        %v513 = vtanh.pop %v509
        %v514 = vmul.f32 %v510, %v510
        %v515 = vmul.f32 %v511, %v511
        %v516 = vmul.f32 %v512, %v512
        %v517 = vmul.f32 %v513, %v513
        %v518 = vsub.f32 1.0, %v514
        %v519 = vsub.f32 1.0, %v515
        %v520 = vsub.f32 1.0, %v516
        %v521 = vsub.f32 1.0, %v517
        %v522 = vmul.f32 %v518, %v494
        %v523 = vmul.f32 %v519, %v497
        %v524 = vmul.f32 %v520, %v500
        %v525 = vmul.f32 %v521, %v503
        %v526 = vmul.f32 %v510, -2.0
        %v527 = vmul.f32 %v511, -2.0
        %v528 = vmul.f32 %v512, -2.0
        %v529 = vmul.f32 %v513, -2.0
        %v530 = vmul.f32 %v526, %v522
        %v531 = vmul.f32 %v527, %v523
        %v532 = vmul.f32 %v528, %v524
        %v533 = vmul.f32 %v529, %v525
        %v534 = vld [vmem:[#allocation7] sm:$0xff]
        %v536 = vsel %vm439, %v518, 0
        %v539 = vsel %vm439, %v519, 0
        %v542 = vsel %vm439, %v520, 0
        %v545 = vsel %vm439, %v521, 0
        %v548 = vsel %vm439, %v530, 0
        %v551 = vsel %vm439, %v531, 0
        %v554 = vsel %vm439, %v532, 0
        %v557 = vsel %vm439, %v533, 0
        %559 = vmatpush.msra.mxu0 0.0
        %560 = vmatpush.msra.mxu0 0.0
        %561 = vmatpush.msra.mxu0 0.0
        %562 = vmatpush.msra.mxu0 0.0
        %563 = vmatpush.msra.mxu0 0.0
        %564 = vmatpush.msra.mxu0 0.0
        %565 = vmatpush.msra.mxu0 0.0
        %566 = vmatpush.msra.mxu0 0.0
        %567 = vmatpush.msra.mxu0 0.0
        %568 = vmatpush.msra.mxu0 0.0
        %569 = vmatpush.msra.mxu0 0.0
        %570 = vmatpush.msra.mxu0 0.0
        %571 = vmatpush.msra.mxu0 0.0
        %572 = vmatpush.msra.mxu0 0.0
        %573 = vmatpush.msra.mxu0 0.0
        %574 = vmatpush.msra.mxu0 %v534
        %575 = vmatmul.f32.gmra.mxu0 %v536
        %v576 = vpop.f32.mrf.mxu0
        %v577 = vadd.f32 0.0, %v576
        %578 = vmatmul.f32.gmra.mxu0 %v539
        %v579 = vpop.f32.mrf.mxu0
        %v580 = vadd.f32 0.0, %v579
        %581 = vmatmul.f32.gmra.mxu0 %v542
        %v582 = vpop.f32.mrf.mxu0
        %v583 = vadd.f32 0.0, %v582
        %584 = vmatmul.f32.gmra.mxu0 %v545
        %v585 = vpop.f32.mrf.mxu0
        %v586 = vadd.f32 0.0, %v585
        %587 = vmatmul.f32.gmra.mxu0 %v548
        %v588 = vpop.f32.mrf.mxu0
        %v589 = vadd.f32 0.0, %v588
        %590 = vmatmul.f32.gmra.mxu0 %v551
        %v591 = vpop.f32.mrf.mxu0
        %v592 = vadd.f32 0.0, %v591
        %593 = vmatmul.f32.gmra.mxu0 %v554
        %v594 = vpop.f32.mrf.mxu0
        %v595 = vadd.f32 0.0, %v594
        %596 = vmatmul.f32.gmra.mxu0 %v557
        %v597 = vpop.f32.mrf.mxu0
        %v598 = vadd.f32 0.0, %v597
        %599 = vdwg.mxu0
        %s600 = scalar_lea.vmem [#allocation2], 8
        %v601 = vld [vmem:[%s600] sm:$0xff]
        %v602 = vld [vmem:[#allocation5 + $0x1] sm:$0x1]
        %v604 = vsel %vm439, %v510, 0
        %v607 = vsel %vm439, %v511, 0
        %v610 = vsel %vm439, %v512, 0
        %v613 = vsel %vm439, %v513, 0
        %v616 = vsel %vm439, %v522, 0
        %v619 = vsel %vm439, %v523, 0
        %v622 = vsel %vm439, %v524, 0
        %v625 = vsel %vm439, %v525, 0
        %627 = vmatpush.msra.mxu0 0.0
        %628 = vmatpush.msra.mxu0 0.0
        %629 = vmatpush.msra.mxu0 0.0
        %630 = vmatpush.msra.mxu0 0.0
        %631 = vmatpush.msra.mxu0 0.0
        %632 = vmatpush.msra.mxu0 0.0
        %633 = vmatpush.msra.mxu0 0.0
        %634 = vmatpush.msra.mxu0 0.0
        %635 = vmatpush.msra.mxu0 0.0
        %636 = vmatpush.msra.mxu0 0.0
        %637 = vmatpush.msra.mxu0 0.0
        %638 = vmatpush.msra.mxu0 0.0
        %639 = vmatpush.msra.mxu0 0.0
        %640 = vmatpush.msra.mxu0 0.0
        %641 = vmatpush.msra.mxu0 0.0
        %642 = vmatpush.msra.mxu0 %v601
        %643 = vmatmul.f32.gmra.mxu0 %v604
        %v644 = vpop.f32.mrf.mxu0
        %v645 = vadd.f32 0.0, %v644
        %646 = vmatmul.f32.gmra.mxu0 %v607
        %v647 = vpop.f32.mrf.mxu0
        %v648 = vadd.f32 0.0, %v647
        %649 = vmatmul.f32.gmra.mxu0 %v610
        %v650 = vpop.f32.mrf.mxu0
        %v651 = vadd.f32 0.0, %v650
        %652 = vmatmul.f32.gmra.mxu0 %v613
        %v653 = vpop.f32.mrf.mxu0
        %v654 = vadd.f32 0.0, %v653
        %655 = vmatmul.f32.gmra.mxu0 %v616
        %v656 = vpop.f32.mrf.mxu0
        %v657 = vadd.f32 0.0, %v656
        %658 = vmatmul.f32.gmra.mxu0 %v619
        %v659 = vpop.f32.mrf.mxu0
        %v660 = vadd.f32 0.0, %v659
        %661 = vmatmul.f32.gmra.mxu0 %v622
        %v662 = vpop.f32.mrf.mxu0
        %v663 = vadd.f32 0.0, %v662
        %664 = vmatmul.f32.gmra.mxu0 %v625
        %v665 = vpop.f32.mrf.mxu0
        %v666 = vadd.f32 0.0, %v665
        %667 = vdwg.mxu0
        %v668 = vperm.slane %v602, 0
        %v669 = vadd.f32 %v645, %v668
        %v670 = vadd.f32 %v648, %v668
        %v671 = vadd.f32 %v651, %v668
        %v672 = vadd.f32 %v654, %v668
        %v673 = vtanh.pop %v669
        %v674 = vtanh.pop %v670
        %v675 = vtanh.pop %v671
        %v676 = vtanh.pop %v672
        %v677 = vmul.f32 %v673, %v673
        %v678 = vmul.f32 %v674, %v674
        %v679 = vmul.f32 %v675, %v675
        %v680 = vmul.f32 %v676, %v676
        %v681 = vsub.f32 1.0, %v677
        %v682 = vsub.f32 1.0, %v678
        %v683 = vsub.f32 1.0, %v679
        %v684 = vsub.f32 1.0, %v680
        %v685 = vmul.f32 %v681, %v657
        %v686 = vmul.f32 %v682, %v660
        %v687 = vmul.f32 %v683, %v663
        %v688 = vmul.f32 %v684, %v666
        %v689 = vmul.f32 %v673, -2.0
        %v690 = vmul.f32 %v674, -2.0
        %v691 = vmul.f32 %v675, -2.0
        %v692 = vmul.f32 %v676, -2.0
        %v693 = vmul.f32 %v689, %v685
        %v694 = vmul.f32 %v690, %v686
        %v695 = vmul.f32 %v691, %v687
        %v696 = vmul.f32 %v692, %v688
        %v697 = vld [vmem:[%s5] sm:$0xff]
        %v699 = vsel %vm439, %v681, 0
        %v702 = vsel %vm439, %v682, 0
        %v705 = vsel %vm439, %v683, 0
        %v708 = vsel %vm439, %v684, 0
        %v711 = vsel %vm439, %v693, 0
        %v714 = vsel %vm439, %v694, 0
        %v717 = vsel %vm439, %v695, 0
        %v720 = vsel %vm439, %v696, 0
        %722 = vmatpush.msra.mxu0 0.0
        %723 = vmatpush.msra.mxu0 0.0
        %724 = vmatpush.msra.mxu0 0.0
        %725 = vmatpush.msra.mxu0 0.0
        %726 = vmatpush.msra.mxu0 0.0
        %727 = vmatpush.msra.mxu0 0.0
        %728 = vmatpush.msra.mxu0 0.0
        %729 = vmatpush.msra.mxu0 0.0
        %730 = vmatpush.msra.mxu0 0.0
        %731 = vmatpush.msra.mxu0 0.0
        %732 = vmatpush.msra.mxu0 0.0
        %733 = vmatpush.msra.mxu0 0.0
        %734 = vmatpush.msra.mxu0 0.0
        %735 = vmatpush.msra.mxu0 0.0
        %736 = vmatpush.msra.mxu0 0.0
        %737 = vmatpush.msra.mxu0 %v697
        %738 = vmatmul.f32.gmra.mxu0 %v699
        %v739 = vpop.f32.mrf.mxu0
        %v740 = vadd.f32 0.0, %v739
        %741 = vmatmul.f32.gmra.mxu0 %v702
        %v742 = vpop.f32.mrf.mxu0
        %v743 = vadd.f32 0.0, %v742
        %744 = vmatmul.f32.gmra.mxu0 %v705
        %v745 = vpop.f32.mrf.mxu0
        %v746 = vadd.f32 0.0, %v745
        %747 = vmatmul.f32.gmra.mxu0 %v708
        %v748 = vpop.f32.mrf.mxu0
        %v749 = vadd.f32 0.0, %v748
        %750 = vmatmul.f32.gmra.mxu0 %v711
        %v751 = vpop.f32.mrf.mxu0
        %v752 = vadd.f32 0.0, %v751
        %753 = vmatmul.f32.gmra.mxu0 %v714
        %v754 = vpop.f32.mrf.mxu0
        %v755 = vadd.f32 0.0, %v754
        %756 = vmatmul.f32.gmra.mxu0 %v717
        %v757 = vpop.f32.mrf.mxu0
        %v758 = vadd.f32 0.0, %v757
        %759 = vmatmul.f32.gmra.mxu0 %v720
        %v760 = vpop.f32.mrf.mxu0
        %v761 = vadd.f32 0.0, %v760
        %762 = vdwg.mxu0
        %s763 = scalar_lea.vmem %s4, 64
        %v764 = vld [vmem:[%s763] sm:$0xff]
        %v765 = vld [vmem:[%s763 + $0x8] sm:$0xff]
        %v766 = vld [vmem:[%s763 + $0x10] sm:$0xff]
        %v767 = vld [vmem:[%s763 + $0x18] sm:$0xff]
        %v768 = vld [vmem:[%s763 + $0x20] sm:$0xff]
        %v769 = vld [vmem:[%s763 + $0x28] sm:$0xff]
        %v770 = vld [vmem:[%s763 + $0x30] sm:$0xff]
        %v771 = vld [vmem:[%s763 + $0x38] sm:$0xff]
        %vm772 = vcmask 523264
        %v774 = vsel %vm772, %v577, 0
        %v777 = vsel %vm772, %v580, 0
        %v780 = vsel %vm772, %v583, 0
        %v783 = vsel %vm772, %v586, 0
        %v786 = vsel %vm772, %v589, 0
        %v789 = vsel %vm772, %v592, 0
        %v792 = vsel %vm772, %v595, 0
        %v795 = vsel %vm772, %v598, 0
        %797 = vmatpush.msra.mxu0 0.0
        %798 = vmatpush.msra.mxu0 0.0
        %799 = vmatpush.msra.mxu0 0.0
        %800 = vmatpush.msra.mxu0 0.0
        %801 = vmatpush.msra.mxu0 0.0
        %802 = vmatpush.msra.mxu0 0.0
        %803 = vmatpush.msra.mxu0 0.0
        %804 = vmatpush.msra.mxu0 0.0
        %805 = vmatpush.msra.mxu0 %v771
        %806 = vmatpush.msra.mxu0 %v770
        %807 = vmatpush.msra.mxu0 %v769
        %808 = vmatpush.msra.mxu0 %v768
        %809 = vmatpush.msra.mxu0 %v767
        %810 = vmatpush.msra.mxu0 %v766
        %811 = vmatpush.msra.mxu0 %v765
        %812 = vmatpush.msra.mxu0 %v764
        %813 = vmatmul.f32.gmra.mxu0 %v774
        %v814 = vpop.f32.mrf.mxu0
        %v815 = vadd.f32 0.0, %v814
        %816 = vmatmul.f32.gmra.mxu0 %v777
        %v817 = vpop.f32.mrf.mxu0
        %v818 = vadd.f32 0.0, %v817
        %819 = vmatmul.f32.gmra.mxu0 %v780
        %v820 = vpop.f32.mrf.mxu0
        %v821 = vadd.f32 0.0, %v820
        %822 = vmatmul.f32.gmra.mxu0 %v783
        %v823 = vpop.f32.mrf.mxu0
        %v824 = vadd.f32 0.0, %v823
        %825 = vmatmul.f32.gmra.mxu0 %v786
        %v826 = vpop.f32.mrf.mxu0
        %v827 = vadd.f32 0.0, %v826
        %828 = vmatmul.f32.gmra.mxu0 %v789
        %v829 = vpop.f32.mrf.mxu0
        %v830 = vadd.f32 0.0, %v829
        %831 = vmatmul.f32.gmra.mxu0 %v792
        %v832 = vpop.f32.mrf.mxu0
        %v833 = vadd.f32 0.0, %v832
        %834 = vmatmul.f32.gmra.mxu0 %v795
        %v835 = vpop.f32.mrf.mxu0
        %v836 = vadd.f32 0.0, %v835
        %837 = vdwg.mxu0
        %v838 = vmul.f32 %v827, %v740
        %v839 = vmul.f32 %v830, %v743
        %v840 = vmul.f32 %v833, %v746
        %v841 = vmul.f32 %v836, %v749
        %v842 = vmul.f32 %v815, %v752
        %v843 = vmul.f32 %v818, %v755
        %v844 = vmul.f32 %v821, %v758
        %v845 = vmul.f32 %v824, %v761
        %v846 = vadd.f32 %v838, %v842
        %v847 = vadd.f32 %v839, %v843
        %v848 = vadd.f32 %v840, %v844
        %v849 = vadd.f32 %v841, %v845
        %v850 = vmul.f32 %v815, %v740
        %v851 = vmul.f32 %v818, %v743
        %v852 = vmul.f32 %v821, %v746
        %v853 = vmul.f32 %v824, %v749
        %s854 = scalar_lea.vmem [#allocation2], 16
        %v855 = vld [vmem:[%s854] sm:$0xff]
        %v856 = vld [vmem:[#allocation5 + $0x2] sm:$0x1]
        %v858 = vsel %vm439, %v673, 0
        %v861 = vsel %vm439, %v674, 0
        %v864 = vsel %vm439, %v675, 0
        %v867 = vsel %vm439, %v676, 0
        %v870 = vsel %vm439, %v685, 0
        %v873 = vsel %vm439, %v686, 0
        %v876 = vsel %vm439, %v687, 0
        %v879 = vsel %vm439, %v688, 0
        %881 = vmatpush.msra.mxu0 0.0
        %882 = vmatpush.msra.mxu0 0.0
        %883 = vmatpush.msra.mxu0 0.0
        %884 = vmatpush.msra.mxu0 0.0
        %885 = vmatpush.msra.mxu0 0.0
        %886 = vmatpush.msra.mxu0 0.0
        %887 = vmatpush.msra.mxu0 0.0
        %888 = vmatpush.msra.mxu0 0.0
        %889 = vmatpush.msra.mxu0 0.0
        %890 = vmatpush.msra.mxu0 0.0
        %891 = vmatpush.msra.mxu0 0.0
        %892 = vmatpush.msra.mxu0 0.0
        %893 = vmatpush.msra.mxu0 0.0
        %894 = vmatpush.msra.mxu0 0.0
        %895 = vmatpush.msra.mxu0 0.0
        %896 = vmatpush.msra.mxu0 %v855
        %897 = vmatmul.f32.gmra.mxu0 %v858
        %v898 = vpop.f32.mrf.mxu0
        %v899 = vadd.f32 0.0, %v898
        %900 = vmatmul.f32.gmra.mxu0 %v861
        %v901 = vpop.f32.mrf.mxu0
        %v902 = vadd.f32 0.0, %v901
        %903 = vmatmul.f32.gmra.mxu0 %v864
        %v904 = vpop.f32.mrf.mxu0
        %v905 = vadd.f32 0.0, %v904
        %906 = vmatmul.f32.gmra.mxu0 %v867
        %v907 = vpop.f32.mrf.mxu0
        %v908 = vadd.f32 0.0, %v907
        %909 = vmatmul.f32.gmra.mxu0 %v870
        %v910 = vpop.f32.mrf.mxu0
        %v911 = vadd.f32 0.0, %v910
        %912 = vmatmul.f32.gmra.mxu0 %v873
        %v913 = vpop.f32.mrf.mxu0
        %v914 = vadd.f32 0.0, %v913
        %915 = vmatmul.f32.gmra.mxu0 %v876
        %v916 = vpop.f32.mrf.mxu0
        %v917 = vadd.f32 0.0, %v916
        %918 = vmatmul.f32.gmra.mxu0 %v879
        %v919 = vpop.f32.mrf.mxu0
        %v920 = vadd.f32 0.0, %v919
        %921 = vdwg.mxu0
        %v922 = vperm.slane %v856, 0
        %v923 = vadd.f32 %v899, %v922
        %v924 = vadd.f32 %v902, %v922
        %v925 = vadd.f32 %v905, %v922
        %v926 = vadd.f32 %v908, %v922
        %v927 = vtanh.pop %v923
        %v928 = vtanh.pop %v924
        %v929 = vtanh.pop %v925
        %v930 = vtanh.pop %v926
        %v931 = vmul.f32 %v927, %v927
        %v932 = vmul.f32 %v928, %v928
        %v933 = vmul.f32 %v929, %v929
        %v934 = vmul.f32 %v930, %v930
        %v935 = vsub.f32 1.0, %v931
        %v936 = vsub.f32 1.0, %v932
        %v937 = vsub.f32 1.0, %v933
        %v938 = vsub.f32 1.0, %v934
        %v939 = vmul.f32 %v935, %v911
        %v940 = vmul.f32 %v936, %v914
        %v941 = vmul.f32 %v937, %v917
        %v942 = vmul.f32 %v938, %v920
        %v943 = vmul.f32 %v927, -2.0
        %v944 = vmul.f32 %v928, -2.0
        %v945 = vmul.f32 %v929, -2.0
        %v946 = vmul.f32 %v930, -2.0
        %v947 = vmul.f32 %v943, %v939
        %v948 = vmul.f32 %v944, %v940
        %v949 = vmul.f32 %v945, %v941
        %v950 = vmul.f32 %v946, %v942
        %v952 = vsel %vm439, %v935, 0
        %v955 = vsel %vm439, %v936, 0
        %v958 = vsel %vm439, %v937, 0
        %v961 = vsel %vm439, %v938, 0
        %v964 = vsel %vm439, %v947, 0
        %v967 = vsel %vm439, %v948, 0
        %v970 = vsel %vm439, %v949, 0
        %v973 = vsel %vm439, %v950, 0
        %975 = vmatpush.msra.mxu0 0.0
        %976 = vmatpush.msra.mxu0 0.0
        %977 = vmatpush.msra.mxu0 0.0
        %978 = vmatpush.msra.mxu0 0.0
        %979 = vmatpush.msra.mxu0 0.0
        %980 = vmatpush.msra.mxu0 0.0
        %981 = vmatpush.msra.mxu0 0.0
        %982 = vmatpush.msra.mxu0 0.0
        %983 = vmatpush.msra.mxu0 0.0
        %984 = vmatpush.msra.mxu0 0.0
        %985 = vmatpush.msra.mxu0 0.0
        %986 = vmatpush.msra.mxu0 0.0
        %987 = vmatpush.msra.mxu0 0.0
        %988 = vmatpush.msra.mxu0 0.0
        %989 = vmatpush.msra.mxu0 0.0
        %990 = vmatpush.msra.mxu0 %v697
        %991 = vmatmul.f32.gmra.mxu0 %v952
        %v992 = vpop.f32.mrf.mxu0
        %v993 = vadd.f32 0.0, %v992
        %994 = vmatmul.f32.gmra.mxu0 %v955
        %v995 = vpop.f32.mrf.mxu0
        %v996 = vadd.f32 0.0, %v995
        %997 = vmatmul.f32.gmra.mxu0 %v958
        %v998 = vpop.f32.mrf.mxu0
        %v999 = vadd.f32 0.0, %v998
        %1000 = vmatmul.f32.gmra.mxu0 %v961
        %v1001 = vpop.f32.mrf.mxu0
        %v1002 = vadd.f32 0.0, %v1001
        %1003 = vmatmul.f32.gmra.mxu0 %v964
        %v1004 = vpop.f32.mrf.mxu0
        %v1005 = vadd.f32 0.0, %v1004
        %1006 = vmatmul.f32.gmra.mxu0 %v967
        %v1007 = vpop.f32.mrf.mxu0
        %v1008 = vadd.f32 0.0, %v1007
        %1009 = vmatmul.f32.gmra.mxu0 %v970
        %v1010 = vpop.f32.mrf.mxu0
        %v1011 = vadd.f32 0.0, %v1010
        %1012 = vmatmul.f32.gmra.mxu0 %v973
        %v1013 = vpop.f32.mrf.mxu0
        %v1014 = vadd.f32 0.0, %v1013
        %1015 = vdwg.mxu0
        %s1016 = scalar_lea.vmem %s4, 128
        %v1017 = vld [vmem:[%s1016] sm:$0xff]
        %v1018 = vld [vmem:[%s1016 + $0x8] sm:$0xff]
        %v1019 = vld [vmem:[%s1016 + $0x10] sm:$0xff]
        %v1020 = vld [vmem:[%s1016 + $0x18] sm:$0xff]
        %v1021 = vld [vmem:[%s1016 + $0x20] sm:$0xff]
        %v1022 = vld [vmem:[%s1016 + $0x28] sm:$0xff]
        %v1023 = vld [vmem:[%s1016 + $0x30] sm:$0xff]
        %v1024 = vld [vmem:[%s1016 + $0x38] sm:$0xff]
        %v1026 = vsel %vm772, %v850, 0
        %v1029 = vsel %vm772, %v851, 0
        %v1032 = vsel %vm772, %v852, 0
        %v1035 = vsel %vm772, %v853, 0
        %v1038 = vsel %vm772, %v846, 0
        %v1041 = vsel %vm772, %v847, 0
        %v1044 = vsel %vm772, %v848, 0
        %v1047 = vsel %vm772, %v849, 0
        %1049 = vmatpush.msra.mxu0 0.0
        %1050 = vmatpush.msra.mxu0 0.0
        %1051 = vmatpush.msra.mxu0 0.0
        %1052 = vmatpush.msra.mxu0 0.0
        %1053 = vmatpush.msra.mxu0 0.0
        %1054 = vmatpush.msra.mxu0 0.0
        %1055 = vmatpush.msra.mxu0 0.0
        %1056 = vmatpush.msra.mxu0 0.0
        %1057 = vmatpush.msra.mxu0 %v1024
        %1058 = vmatpush.msra.mxu0 %v1023
        %1059 = vmatpush.msra.mxu0 %v1022
        %1060 = vmatpush.msra.mxu0 %v1021
        %1061 = vmatpush.msra.mxu0 %v1020
        %1062 = vmatpush.msra.mxu0 %v1019
        %1063 = vmatpush.msra.mxu0 %v1018
        %1064 = vmatpush.msra.mxu0 %v1017
        %1065 = vmatmul.f32.gmra.mxu0 %v1026
        %v1066 = vpop.f32.mrf.mxu0
        %v1067 = vadd.f32 0.0, %v1066
        %1068 = vmatmul.f32.gmra.mxu0 %v1029
        %v1069 = vpop.f32.mrf.mxu0
        %v1070 = vadd.f32 0.0, %v1069
        %1071 = vmatmul.f32.gmra.mxu0 %v1032
        %v1072 = vpop.f32.mrf.mxu0
        %v1073 = vadd.f32 0.0, %v1072
        %1074 = vmatmul.f32.gmra.mxu0 %v1035
        %v1075 = vpop.f32.mrf.mxu0
        %v1076 = vadd.f32 0.0, %v1075
        %1077 = vmatmul.f32.gmra.mxu0 %v1038
        %v1078 = vpop.f32.mrf.mxu0
        %v1079 = vadd.f32 0.0, %v1078
        %1080 = vmatmul.f32.gmra.mxu0 %v1041
        %v1081 = vpop.f32.mrf.mxu0
        %v1082 = vadd.f32 0.0, %v1081
        %1083 = vmatmul.f32.gmra.mxu0 %v1044
        %v1084 = vpop.f32.mrf.mxu0
        %v1085 = vadd.f32 0.0, %v1084
        %1086 = vmatmul.f32.gmra.mxu0 %v1047
        %v1087 = vpop.f32.mrf.mxu0
        %v1088 = vadd.f32 0.0, %v1087
        %1089 = vdwg.mxu0
        %v1090 = vmul.f32 %v1079, %v993
        %v1091 = vmul.f32 %v1082, %v996
        %v1092 = vmul.f32 %v1085, %v999
        %v1093 = vmul.f32 %v1088, %v1002
        %v1094 = vmul.f32 %v1067, %v1005
        %v1095 = vmul.f32 %v1070, %v1008
        %v1096 = vmul.f32 %v1073, %v1011
        %v1097 = vmul.f32 %v1076, %v1014
        %v1098 = vadd.f32 %v1090, %v1094
        %v1099 = vadd.f32 %v1091, %v1095
        %v1100 = vadd.f32 %v1092, %v1096
        %v1101 = vadd.f32 %v1093, %v1097
        %v1102 = vmul.f32 %v1067, %v993
        %v1103 = vmul.f32 %v1070, %v996
        %v1104 = vmul.f32 %v1073, %v999
        %v1105 = vmul.f32 %v1076, %v1002
        %1106 = vst.msk [vmem:[%s420] sm:$0xff] %vm439, %v927
        %1107 = vst.msk [vmem:[%s420 + $0x8] sm:$0xff] %vm439, %v928
        %1108 = vst.msk [vmem:[%s420 + $0x10] sm:$0xff] %vm439, %v929
        %1109 = vst.msk [vmem:[%s420 + $0x18] sm:$0xff] %vm439, %v930
        %1110 = vst.msk [vmem:[%s426] sm:$0xff] %vm439, %v939
        %1111 = vst.msk [vmem:[%s426 + $0x8] sm:$0xff] %vm439, %v940
        %1112 = vst.msk [vmem:[%s426 + $0x10] sm:$0xff] %vm439, %v941
        %1113 = vst.msk [vmem:[%s426 + $0x18] sm:$0xff] %vm439, %v942
        %1118 = vrot.lane.b32.xlu0 %v1098, 64
        %v1119 = vpop.permute.xlu0 %1118
        %1120 = vrot.lane.b32.xlu0 %v1099, 64
        %v1121 = vpop.permute.xlu0 %1120
        %1122 = vrot.lane.b32.xlu0 %v1100, 64
        %v1123 = vpop.permute.xlu0 %1122
        %1124 = vrot.lane.b32.xlu0 %v1101, 64
        %v1125 = vpop.permute.xlu0 %1124
        %v1130 = vsel %vm772, %v1102, %v1119
        %v1131 = vsel %vm772, %v1103, %v1121
        %v1132 = vsel %vm772, %v1104, %v1123
        %v1133 = vsel %vm772, %v1105, %v1125
        %1134 = vst [vmem:[%s403] sm:$0xff] %v1130
        %1135 = vst [vmem:[%s403 + $0x8] sm:$0xff] %v1131
        %1136 = vst [vmem:[%s403 + $0x10] sm:$0xff] %v1132
        %1137 = vst [vmem:[%s403 + $0x18] sm:$0xff] %v1133
        %s1138 = smul.u32 4, %s26
        %p1139 = scmp.lt.s32.totalorder %s1138, 11
        %s1140 = scalar_select %p1139, %s1138, 11
        %s1141 = smul.addr %s1140, 8
        %s1142 = scalar_lea.vmem %s7, %s1141
        %s1143 = smul.u32 4, %s26
        %p1144 = scmp.lt.s32.totalorder %s1143, 11
        %s1145 = scalar_select %p1144, %s1143, 11
        %s1146 = smul.addr %s1145, 8
        %s1147 = scalar_lea.vmem %s8, %s1146
        %s1148 = sand.u32 %s243, 1
        %s1149 = scalar_lea.sflag [#allocation4], %s1148
        %s1150 = sand.u32 %s243, 1
        %s1151 = smul.addr %s1150, 32
        %s1152 = scalar_lea.vmem [#allocation8], %s1151
        // Predicated region
        $region61: #{tpu_custom_call.1} parent=47 // pred_check
          %p1153 = pneg %p201
        $region62: #{tpu_custom_call.1} parent=47 // pred_check_branch
          %1155 = sbr.rel (%p1153) target = $region64
        $region63: #{tpu_custom_call.1} parent=47 // pred_region
          %s1156 = smul.u32 4, %s26
        $region64: #{tpu_custom_call.1} parent=47 // pred_fallthru
          _
        // Predicated region
        $region65: #{tpu_custom_call.1} parent=47 // pred_check
          %p1157 = pneg %p227
        $region66: #{tpu_custom_call.1} parent=47 // pred_check_branch
          %1159 = sbr.rel (%p1157) target = $region68
        $region67: #{tpu_custom_call.1} parent=47 // pred_region
          %s1160 = smul.u32 4, %s26
        $region68: #{tpu_custom_call.1} parent=47 // pred_fallthru
          _
        // Predicated region
        $region69: #{tpu_custom_call.1} parent=47 // pred_check
          %p1161 = pneg %p253
        $region70: #{tpu_custom_call.1} parent=47 // pred_check_branch
          %1163 = sbr.rel (%p1161) target = $region72
        $region71: #{tpu_custom_call.1} parent=47 // pred_region
          %s1164 = smul.u32 4, %s26
          %1166 = vsyncadd %s1149, 0
          %s1167 = smul.addr %s1164, 8
          %s1168 = scalar_lea.hbm %s9, %s1167
          %s1169 = sshll.u32 %s1152, 4
          %s1170 = int_to_ptr.vmem [resolvable:$true] %s1169
          %s1171 = sshll.u32 %s1168, 4
          %s1172 = int_to_ptr.hbm [resolvable:$true] %s1171
          %1177 = dma.vmem_to_hbm [thread:$0]  %s1170, 512, %s1172, %s1149, 128, 128, 8
        $region72: #{tpu_custom_call.1} parent=47 // pred_fallthru
          _
      $region48: #{tpu_custom_call.1} parent=5 // pred_fallthru
        _
      %p1178 = scmp.le.s32.totalorder 2, %s21
      // Predicated region
      $region73: #{tpu_custom_call.1} parent=5 // pred_check
        %p1179 = pneg %p1178
      $region74: #{tpu_custom_call.1} parent=5 // pred_check_branch
        %1181 = sbr.rel (%p1179) target = $region76
      $region75: #{tpu_custom_call.1} parent=5 // pred_region
        %s1182 = ssub.s32 %s21, 2
        // Predicated region
        $region77: #{tpu_custom_call.1} parent=75 // pred_check
          %p1183 = pneg %p207
        $region78: #{tpu_custom_call.1} parent=75 // pred_check_branch
          %1185 = sbr.rel (%p1183) target = $region80
        $region79: #{tpu_custom_call.1} parent=75 // pred_region
          %s1186 = smul.u32 4, %s27
          %p1187 = scmp.lt.s32.totalorder %s1186, 11
          %s1188 = scalar_select %p1187, %s1186, 11
          %s1189 = smul.addr %s1188, 8
          %s1190 = scalar_lea.vmem %s7, %s1189
        $region80: #{tpu_custom_call.1} parent=75 // pred_fallthru
          _
        // Predicated region
        $region81: #{tpu_custom_call.1} parent=75 // pred_check
          %p1191 = pneg %p233
        $region82: #{tpu_custom_call.1} parent=75 // pred_check_branch
          %1193 = sbr.rel (%p1191) target = $region84
        $region83: #{tpu_custom_call.1} parent=75 // pred_region
          %s1194 = smul.u32 4, %s27
          %p1195 = scmp.lt.s32.totalorder %s1194, 11
          %s1196 = scalar_select %p1195, %s1194, 11
          %s1197 = smul.addr %s1196, 8
          %s1198 = scalar_lea.vmem %s8, %s1197
        $region84: #{tpu_custom_call.1} parent=75 // pred_fallthru
          _
        // Predicated region
        $region85: #{tpu_custom_call.1} parent=75 // pred_check
          %p1199 = pneg %p259
        $region86: #{tpu_custom_call.1} parent=75 // pred_check_branch
          %1201 = sbr.rel (%p1199) target = $region88
        $region87: #{tpu_custom_call.1} parent=75 // pred_region
          %s1202 = sand.u32 %s244, 1
          %s1203 = scalar_lea.sflag [#allocation4], %s1202
          %s1204 = sand.u32 %s244, 1
          %s1205 = smul.addr %s1204, 32
          %s1206 = scalar_lea.vmem [#allocation8], %s1205
          %1208 = dma.done %s1203, 512
        $region88: #{tpu_custom_call.1} parent=75 // pred_fallthru
          _
      $region76: #{tpu_custom_call.1} parent=5 // pred_fallthru
        _
    $region6: #{tpu_custom_call.1} parent=1 // loop_footer
      %s25 = sadd.s32 1, %s21
    $region7: #{tpu_custom_call.1} parent=1 // loop_footer_branch
      %20 = sbr.rel target = $region3
    $region8: #{tpu_custom_call.1} parent=1 // loop_exit
      _
    %1209 = vsyncpa [#allocation3], 1
    %s1210 = scalar_lea.sflag [#allocation3], 1
    %1211 = vsyncpa %s1210, 1
    %1212 = vsyncpa [#allocation6], 1
    %1213 = vsyncpa [#allocation4], 1
    %s1214 = scalar_lea.sflag [#allocation4], 1
    %1215 = vsyncpa %s1214, 1

</llo_original>
